<compile_context>
chip_gen: v7x
topology: tpu7x:2x2x1
jax: 0.10.0
libtpu: 0.0.40
codegen_flags: <defaults>
</compile_context>

<pallas_src>
import jax
import jax.numpy as jnp
from jax import lax
from jax.experimental import pallas as pl
from jax.experimental.pallas import tpu as pltpu

H1 = 256
H2 = 512
BN_EPS = 1e-5
LRELU_SLOPE = 0.2
LANES = 128


def _round_up(x, m):
    return ((x + m - 1) // m) * m


def _generator_kernel(z_ref,
                      w1_ref, g1_ref, be1_ref,
                      w2_ref, g2_ref, be2_ref,
                      w3_ref, b3_ref,
                      out_ref):
    def bn_lrelu(h, gamma, beta):
        # Two-pass batch stats in f32 (avoids E[h^2]-mu^2 cancellation).
        mu = jnp.mean(h, axis=0, keepdims=True)
        var = jnp.mean(jnp.square(h - mu), axis=0, keepdims=True)  # biased var
        s = gamma * lax.rsqrt(var + BN_EPS)            # folded scale (EUP rsqrt)
        shift = beta - mu * s                          # folded shift
        h = h * s + shift                              # one FMA per element
        return jnp.maximum(h, LRELU_SLOPE * h)         # LeakyReLU(0.2)

    # ---- Layer 1: Linear (bias cancelled by BN) -> BN -> LeakyReLU ----
    h = jnp.dot(z_ref[...].astype(jnp.bfloat16), w1_ref[...],
                preferred_element_type=jnp.float32)
    h = bn_lrelu(h, g1_ref[...], be1_ref[...])

    # ---- Layer 2: Linear (bias cancelled by BN) -> BN -> LeakyReLU ----
    h = jnp.dot(h.astype(jnp.bfloat16), w2_ref[...],
                preferred_element_type=jnp.float32)
    h = bn_lrelu(h, g2_ref[...], be2_ref[...])

    # ---- Layer 3: Linear (+ bias) -> Tanh ----
    h = jnp.dot(h.astype(jnp.bfloat16), w3_ref[...],
                preferred_element_type=jnp.float32) + b3_ref[...]
    out_ref[...] = jnp.tanh(h).astype(out_ref.dtype)


def prepare_kernel_params(params):
    """One-time conversion of f32 reference params into kernel-ready form.

    * w1 rows zero-padded to a 128-multiple input width (matches padded z),
    * w3/b3 columns zero-padded to a 128-multiple output width,
    * all matmul weights cast to bf16 once (not per call),
    * BN gamma/beta and b3 stay f32.
    """
    input_dim = params["w1"].shape[0]
    output_dim = params["w3"].shape[1]
    in_pad = _round_up(input_dim, LANES)
    out_pad = _round_up(output_dim, LANES)

    w1 = params["w1"]
    if in_pad != input_dim:
        w1 = jnp.pad(w1, ((0, in_pad - input_dim), (0, 0)))
    w3 = params["w3"]
    b3 = params["b3"]
    if out_pad != output_dim:
        w3 = jnp.pad(w3, ((0, 0), (0, out_pad - output_dim)))
        b3 = jnp.pad(b3, ((0, 0), (0, out_pad - output_dim)))

    return {
        "w1": w1.astype(jnp.bfloat16),
        "gamma1": params["gamma1"], "beta1": params["beta1"],
        "w2": params["w2"].astype(jnp.bfloat16),
        "gamma2": params["gamma2"], "beta2": params["beta2"],
        "w3": w3.astype(jnp.bfloat16),
        "b3": b3,
        "input_dim": input_dim, "in_pad": in_pad,
        "output_dim": output_dim, "out_pad": out_pad,
    }


def generator_forward(z, kparams):
    """z: (B, input_dim) float32. kparams: output of prepare_kernel_params.

    Note: like PyTorch training-mode BatchNorm1d, this assumes B >= 2.
    """
    B = z.shape[0]
    in_pad = kparams["in_pad"]
    out_pad = kparams["out_pad"]
    output_dim = kparams["output_dim"]

    # Lane-dense LHS for the layer-1 matmul (tiny per-call pad of the noise).
    if in_pad != z.shape[1]:
        z = jnp.pad(z, ((0, 0), (0, in_pad - z.shape[1])))

    vmem = pl.BlockSpec(memory_space=pltpu.MemorySpace.VMEM)
    args = (
        z,
        kparams["w1"], kparams["gamma1"], kparams["beta1"],
        kparams["w2"], kparams["gamma2"], kparams["beta2"],
        kparams["w3"], kparams["b3"],
    )
    out = pl.pallas_call(
        _generator_kernel,
        out_shape=jax.ShapeDtypeStruct((B, out_pad), jnp.float32),
        in_specs=[vmem] * len(args),
        out_specs=vmem,
    )(*args)
    return out[:, :output_dim]


def init_generator_params(key, input_dim, output_dim):
    """Deterministic synthetic parameters matching the nn.Module shapes.

    Linear weights are stored transposed relative to PyTorch: (in, out).
    Biases / BN affine params are stored as (1, features) for clean 2-D
    broadcasting.  b1/b2 are kept for the reference model even though the
    kernel (correctly) ignores them — BN cancels them exactly.
    """
    ks = jax.random.split(key, 6)

    def lin(kw, kb, fan_in, fan_out):
        bound = 1.0 / jnp.sqrt(fan_in)
        w = jax.random.uniform(kw, (fan_in, fan_out), jnp.float32, -bound, bound)
        b = jax.random.uniform(kb, (1, fan_out), jnp.float32, -bound, bound)
        return w, b

    w1, b1 = lin(ks[0], ks[1], input_dim, H1)
    w2, b2 = lin(ks[2], ks[3], H1, H2)
    w3, b3 = lin(ks[4], ks[5], H2, output_dim)

    return {
        "w1": w1, "b1": b1,
        "gamma1": jnp.ones((1, H1), jnp.float32),
        "beta1": jnp.zeros((1, H1), jnp.float32),
        "w2": w2, "b2": b2,
        "gamma2": jnp.ones((1, H2), jnp.float32),
        "beta2": jnp.zeros((1, H2), jnp.float32),
        "w3": w3, "b3": b3,
    }


def _reference_forward(z, p):
    """Pure-JAX f32 reference (exact PyTorch training-mode semantics,
    including the pre-BN biases that the kernel drops by algebra)."""
    def bn_lrelu(h, g, b):
        mu = jnp.mean(h, axis=0, keepdims=True)
        var = jnp.mean((h - mu) ** 2, axis=0, keepdims=True)
        h = (h - mu) / jnp.sqrt(var + BN_EPS) * g + b
        return jnp.where(h > 0, h, LRELU_SLOPE * h)

    h = z @ p["w1"] + p["b1"]
    h = bn_lrelu(h, p["gamma1"], p["beta1"])
    h = h @ p["w2"] + p["b2"]
    h = bn_lrelu(h, p["gamma2"], p["beta2"])
    h = h @ p["w3"] + p["b3"]
    return jnp.tanh(h)


if __name__ == "__main__":
    key = jax.random.PRNGKey(0)
    k_param, k_z = jax.random.split(key)

    batch = 8
    input_dim = 32   # noise dimensionality
    output_dim = 64  # generated-data dimensionality

    params = init_generator_params(k_param, input_dim, output_dim)
    kparams = prepare_kernel_params(params)      # one-time bf16 cast + pad
    z = jax.random.normal(k_z, (batch, input_dim), jnp.float32)

    out = generator_forward(z, kparams)
    out = jax.block_until_ready(out)

    ref = _reference_forward(z, params)
    assert out.shape == (batch, output_dim)
    # bf16 matmul operands (f32 accumulation) vs. pure-f32 reference:
    # tanh-bounded outputs agree to a few 1e-2.
    assert jnp.allclose(out, ref, atol=6e-2, rtol=0.0), float(
        jnp.max(jnp.abs(out - ref)))

    print("KERNEL_OK")
</pallas_src>

<mosaic_0001>
module attributes {stable_mosaic.version = 11 : i64} {
  func.func @_generator_kernel(%arg0: memref<8x128xf32, #tpu.memory_space<vmem>>, %arg1: memref<128x256xbf16, #tpu.memory_space<vmem>>, %arg2: memref<1x256xf32, #tpu.memory_space<vmem>>, %arg3: memref<1x256xf32, #tpu.memory_space<vmem>>, %arg4: memref<256x512xbf16, #tpu.memory_space<vmem>>, %arg5: memref<1x512xf32, #tpu.memory_space<vmem>>, %arg6: memref<1x512xf32, #tpu.memory_space<vmem>>, %arg7: memref<512x128xbf16, #tpu.memory_space<vmem>>, %arg8: memref<1x128xf32, #tpu.memory_space<vmem>>, %arg9: memref<8x128xf32, #tpu.memory_space<vmem>>) attributes {dimension_semantics = [], scalar_prefetch = 0 : i64, scratch_operands = 0 : i64, tpu.core_type = #tpu.core_type<tc>} {
    %c0 = arith.constant 0 : index
    %c0_0 = arith.constant 0 : index
    %0 = vector.load %arg0[%c0, %c0_0] : memref<8x128xf32, #tpu.memory_space<vmem>>, vector<8x128xf32>
    %1 = arith.truncf %0 : vector<8x128xf32> to vector<8x128xbf16>
    %c0_1 = arith.constant 0 : index
    %c0_2 = arith.constant 0 : index
    %2 = vector.load %arg1[%c0_1, %c0_2] : memref<128x256xbf16, #tpu.memory_space<vmem>>, vector<128x256xbf16>
    %cst = arith.constant dense<0.000000e+00> : vector<8x256xf32>
    %3 = tpu.matmul %1, %2, %cst {dimension_numbers = #tpu.dot_dimension_numbers<[1], [0], [0], [1], [0, 0, 1, 1], [], []>} : vector<8x128xbf16>, vector<128x256xbf16>, vector<8x256xf32> -> vector<8x256xf32>
    %c0_3 = arith.constant 0 : index
    %c0_4 = arith.constant 0 : index
    %4 = vector.load %arg2[%c0_3, %c0_4] : memref<1x256xf32, #tpu.memory_space<vmem>>, vector<1x256xf32>
    %c0_5 = arith.constant 0 : index
    %c0_6 = arith.constant 0 : index
    %5 = vector.load %arg3[%c0_5, %c0_6] : memref<1x256xf32, #tpu.memory_space<vmem>>, vector<1x256xf32>
    %cst_7 = arith.constant dense<0.000000e+00> : vector<256xf32>
    %6 = vector.multi_reduction <add>, %3, %cst_7 [0] : vector<8x256xf32> to vector<256xf32>
    %7 = vector.shape_cast %6 : vector<256xf32> to vector<1x256xf32>
    %cst_8 = arith.constant 8.000000e+00 : f32
    %8 = vector.broadcast %cst_8 : f32 to vector<1x256xf32>
    %9 = arith.divf %7, %8 : vector<1x256xf32>
    %10 = vector.broadcast %9 : vector<1x256xf32> to vector<8x256xf32>
    %11 = arith.subf %3, %10 : vector<8x256xf32>
    %12 = arith.mulf %11, %11 : vector<8x256xf32>
    %cst_9 = arith.constant dense<0.000000e+00> : vector<256xf32>
    %13 = vector.multi_reduction <add>, %12, %cst_9 [0] : vector<8x256xf32> to vector<256xf32>
    %14 = vector.shape_cast %13 : vector<256xf32> to vector<1x256xf32>
    %cst_10 = arith.constant 8.000000e+00 : f32
    %15 = vector.broadcast %cst_10 : f32 to vector<1x256xf32>
    %16 = arith.divf %14, %15 : vector<1x256xf32>
    %cst_11 = arith.constant 9.99999974E-6 : f32
    %17 = vector.broadcast %cst_11 : f32 to vector<1x256xf32>
    %18 = arith.addf %16, %17 : vector<1x256xf32>
    %19 = math.rsqrt %18 : vector<1x256xf32>
    %20 = arith.mulf %4, %19 : vector<1x256xf32>
    %21 = arith.mulf %9, %20 : vector<1x256xf32>
    %22 = arith.subf %5, %21 : vector<1x256xf32>
    %23 = vector.broadcast %20 : vector<1x256xf32> to vector<8x256xf32>
    %24 = arith.mulf %3, %23 : vector<8x256xf32>
    %25 = vector.broadcast %22 : vector<1x256xf32> to vector<8x256xf32>
    %26 = arith.addf %24, %25 : vector<8x256xf32>
    %cst_12 = arith.constant 2.000000e-01 : f32
    %27 = vector.broadcast %cst_12 : f32 to vector<8x256xf32>
    %28 = arith.mulf %27, %26 : vector<8x256xf32>
    %29 = arith.maximumf %26, %28 : vector<8x256xf32>
    %30 = arith.truncf %29 : vector<8x256xf32> to vector<8x256xbf16>
    %c0_13 = arith.constant 0 : index
    %c0_14 = arith.constant 0 : index
    %31 = vector.load %arg4[%c0_13, %c0_14] : memref<256x512xbf16, #tpu.memory_space<vmem>>, vector<256x512xbf16>
    %cst_15 = arith.constant dense<0.000000e+00> : vector<8x512xf32>
    %32 = tpu.matmul %30, %31, %cst_15 {dimension_numbers = #tpu.dot_dimension_numbers<[1], [0], [0], [1], [0, 0, 1, 1], [], []>} : vector<8x256xbf16>, vector<256x512xbf16>, vector<8x512xf32> -> vector<8x512xf32>
    %c0_16 = arith.constant 0 : index
    %c0_17 = arith.constant 0 : index
    %33 = vector.load %arg5[%c0_16, %c0_17] : memref<1x512xf32, #tpu.memory_space<vmem>>, vector<1x512xf32>
    %c0_18 = arith.constant 0 : index
    %c0_19 = arith.constant 0 : index
    %34 = vector.load %arg6[%c0_18, %c0_19] : memref<1x512xf32, #tpu.memory_space<vmem>>, vector<1x512xf32>
    %cst_20 = arith.constant dense<0.000000e+00> : vector<512xf32>
    %35 = vector.multi_reduction <add>, %32, %cst_20 [0] : vector<8x512xf32> to vector<512xf32>
    %36 = vector.shape_cast %35 : vector<512xf32> to vector<1x512xf32>
    %cst_21 = arith.constant 8.000000e+00 : f32
    %37 = vector.broadcast %cst_21 : f32 to vector<1x512xf32>
    %38 = arith.divf %36, %37 : vector<1x512xf32>
    %39 = vector.broadcast %38 : vector<1x512xf32> to vector<8x512xf32>
    %40 = arith.subf %32, %39 : vector<8x512xf32>
    %41 = arith.mulf %40, %40 : vector<8x512xf32>
    %cst_22 = arith.constant dense<0.000000e+00> : vector<512xf32>
    %42 = vector.multi_reduction <add>, %41, %cst_22 [0] : vector<8x512xf32> to vector<512xf32>
    %43 = vector.shape_cast %42 : vector<512xf32> to vector<1x512xf32>
    %cst_23 = arith.constant 8.000000e+00 : f32
    %44 = vector.broadcast %cst_23 : f32 to vector<1x512xf32>
    %45 = arith.divf %43, %44 : vector<1x512xf32>
    %cst_24 = arith.constant 9.99999974E-6 : f32
    %46 = vector.broadcast %cst_24 : f32 to vector<1x512xf32>
    %47 = arith.addf %45, %46 : vector<1x512xf32>
    %48 = math.rsqrt %47 : vector<1x512xf32>
    %49 = arith.mulf %33, %48 : vector<1x512xf32>
    %50 = arith.mulf %38, %49 : vector<1x512xf32>
    %51 = arith.subf %34, %50 : vector<1x512xf32>
    %52 = vector.broadcast %49 : vector<1x512xf32> to vector<8x512xf32>
    %53 = arith.mulf %32, %52 : vector<8x512xf32>
    %54 = vector.broadcast %51 : vector<1x512xf32> to vector<8x512xf32>
    %55 = arith.addf %53, %54 : vector<8x512xf32>
    %cst_25 = arith.constant 2.000000e-01 : f32
    %56 = vector.broadcast %cst_25 : f32 to vector<8x512xf32>
    %57 = arith.mulf %56, %55 : vector<8x512xf32>
    %58 = arith.maximumf %55, %57 : vector<8x512xf32>
    %59 = arith.truncf %58 : vector<8x512xf32> to vector<8x512xbf16>
    %c0_26 = arith.constant 0 : index
    %c0_27 = arith.constant 0 : index
    %60 = vector.load %arg7[%c0_26, %c0_27] : memref<512x128xbf16, #tpu.memory_space<vmem>>, vector<512x128xbf16>
    %cst_28 = arith.constant dense<0.000000e+00> : vector<8x128xf32>
    %61 = tpu.matmul %59, %60, %cst_28 {dimension_numbers = #tpu.dot_dimension_numbers<[1], [0], [0], [1], [0, 0, 1, 1], [], []>} : vector<8x512xbf16>, vector<512x128xbf16>, vector<8x128xf32> -> vector<8x128xf32>
    %c0_29 = arith.constant 0 : index
    %c0_30 = arith.constant 0 : index
    %62 = vector.load %arg8[%c0_29, %c0_30] : memref<1x128xf32, #tpu.memory_space<vmem>>, vector<1x128xf32>
    %63 = vector.broadcast %62 : vector<1x128xf32> to vector<8x128xf32>
    %64 = arith.addf %61, %63 : vector<8x128xf32>
    %65 = math.tanh %64 : vector<8x128xf32>
    %c0_31 = arith.constant 0 : index
    %c0_32 = arith.constant 0 : index
    %66 = vector.load %arg9[%c0_31, %c0_32] : memref<8x128xf32, #tpu.memory_space<vmem>>, vector<8x128xf32>
    tpu.vector_store %arg9[%c0_31, %c0_32], %65 {strides = array<i32>} : memref<8x128xf32, #tpu.memory_space<vmem>>, vector<8x128xf32>,
    return
  }
}

</mosaic_0001>

<llo_original>
// kernel: tpu_custom_call.1
$region0: #{tpu_custom_call.1}
  #allocation0 [shape = 'u32[]', space=smem, size = 0x4, offset = 0x4, fixed_abs, tag = 'smem constant byte address 0x4 - core index']
  #allocation1 [shape = 'u32[144,128]{1,0:T(1,128)}', space=vmem, size = 0x12000, scoped, tag = 'internal scratch']
  %s0 = inlined_call_operand.hbm [shape: f32[8,128], index: 0, kind: input, shape index: {}]
  %s1 = inlined_call_operand.hbm [shape: bf16[128,256], index: 1, kind: input, shape index: {}]
  %s2 = inlined_call_operand.vmem [shape: f32[1,256], index: 2, kind: input, shape index: {}]
  %s3 = inlined_call_operand.hbm [shape: f32[1,256], index: 3, kind: input, shape index: {}]
  %s4 = inlined_call_operand.hbm [shape: bf16[256,512], index: 4, kind: input, shape index: {}]
  %s5 = inlined_call_operand.vmem [shape: f32[1,512], index: 5, kind: input, shape index: {}]
  %s6 = inlined_call_operand.vmem [shape: f32[1,512], index: 6, kind: input, shape index: {}]
  %s7 = inlined_call_operand.hbm [shape: bf16[512,128], index: 7, kind: input, shape index: {}]
  %s8 = inlined_call_operand.vmem [shape: f32[1,128], index: 8, kind: input, shape index: {}]
  %s9 = inlined_call_operand.hbm [shape: f32[8,128], index: 9, kind: output, shape index: {}]
  %s10 = sld [smem:[#allocation0]]
  $region66: #{tpu_custom_call.1} parent=0
    _
  %s12 = ssub.s32 1, %s10
  %s13 = scalar_select 0, %s12, %s10
  $region1: #{tpu_custom_call.1} parent=0
    #allocation2 [shape = 'u8[4096]{0}', space=vmem, size = 0x1000, scoped, tag = 'input window, operand 0, single buffered']
    #allocation3 [shape = 's32[1]{0}', space=sflag, size = 0x4, scoped, tag = 'scoped memory for tpu_custom_call.1']
    #allocation4 [shape = 's32[1]{0}', space=sflag, size = 0x4, scoped, tag = 'scoped memory for tpu_custom_call.1']
    #allocation5 [shape = 'u8[65536]{0}', space=vmem, size = 0x10000, scoped, tag = 'input window, operand 1, single buffered']
    #allocation6 [shape = 's32[1]{0}', space=sflag, size = 0x4, scoped, tag = 'scoped memory for tpu_custom_call.1']
    #allocation7 [shape = 'u8[1024]{0}', space=vmem, size = 0x400, scoped, tag = 'input window, operand 3, single buffered']
    #allocation8 [shape = 'u8[262144]{0}', space=vmem, size = 0x40000, scoped, tag = 'input window, operand 4, single buffered']
    #allocation9 [shape = 's32[1]{0}', space=sflag, size = 0x4, scoped, tag = 'scoped memory for tpu_custom_call.1']
    #allocation10 [shape = 'u8[131072]{0}', space=vmem, size = 0x20000, scoped, tag = 'input window, operand 7, single buffered']
    #allocation11 [shape = 'u8[4096]{0}', space=vmem, size = 0x1000, scoped, tag = 'output window, operand 0, single buffered']
    %14 = vsyncpa [#allocation3], 0
    %15 = vsyncpa [#allocation6], 0
    %16 = vsyncpa [#allocation9], 0
    %17 = vsyncpa [#allocation4], 0
    // Predicated region
    $region2: #{tpu_custom_call.1} parent=1 // pred_check
      _
    $region3: #{tpu_custom_call.1} parent=1 // pred_check_branch
      %19 = sbr.rel (0) target = $region5
    $region4: #{tpu_custom_call.1} parent=1 // pred_region
      %s21 = ssub.s32 128, 128
      %22 = vsyncadd [#allocation3], %s21
      %s24 = sshll.u32 [#allocation2], 4
      %s25 = int_to_ptr.vmem [resolvable:$true] %s24
      %27 = dma.hbm_to_vmem [thread:$0]  %s0, 128, %s25, [#allocation3]
    $region5: #{tpu_custom_call.1} parent=1 // pred_fallthru
      _
    // Predicated region
    $region6: #{tpu_custom_call.1} parent=1 // pred_check
      _
    $region7: #{tpu_custom_call.1} parent=1 // pred_check_branch
      %29 = sbr.rel (0) target = $region9
    $region8: #{tpu_custom_call.1} parent=1 // pred_region
      %s31 = ssub.s32 2048, 2048
      %32 = vsyncadd [#allocation6], %s31
      %s33 = sshll.u32 [#allocation5], 4
      %s34 = int_to_ptr.vmem [resolvable:$true] %s33
      %39 = dma.hbm_to_vmem [thread:$0]  %s1, 2048, %s34, [#allocation6], 128, 128, 8
    $region9: #{tpu_custom_call.1} parent=1 // pred_fallthru
      _
    // Predicated region
    $region10: #{tpu_custom_call.1} parent=1 // pred_check
      _
    $region11: #{tpu_custom_call.1} parent=1 // pred_check_branch
      %41 = sbr.rel (0) target = $region13
    $region12: #{tpu_custom_call.1} parent=1 // pred_region
      _
    $region13: #{tpu_custom_call.1} parent=1 // pred_fallthru
      _
    // Predicated region
    $region14: #{tpu_custom_call.1} parent=1 // pred_check
      _
    $region15: #{tpu_custom_call.1} parent=1 // pred_check_branch
      %43 = sbr.rel (0) target = $region17
    $region16: #{tpu_custom_call.1} parent=1 // pred_region
      %s45 = ssub.s32 32, 32
      %46 = vsyncadd [#allocation6], %s45
      %s48 = sshll.u32 [#allocation7], 4
      %s49 = int_to_ptr.vmem [resolvable:$true] %s48
      %51 = dma.hbm_to_vmem [thread:$0]  %s3, 32, %s49, [#allocation6]
    $region17: #{tpu_custom_call.1} parent=1 // pred_fallthru
      _
    // Predicated region
    $region18: #{tpu_custom_call.1} parent=1 // pred_check
      _
    $region19: #{tpu_custom_call.1} parent=1 // pred_check_branch
      %53 = sbr.rel (0) target = $region21
    $region20: #{tpu_custom_call.1} parent=1 // pred_region
      %s55 = ssub.s32 8192, 8192
      %56 = vsyncadd [#allocation9], %s55
      %s57 = sshll.u32 [#allocation8], 4
      %s58 = int_to_ptr.vmem [resolvable:$true] %s57
      %63 = dma.hbm_to_vmem [thread:$0]  %s4, 8192, %s58, [#allocation9], 256, 256, 16
    $region21: #{tpu_custom_call.1} parent=1 // pred_fallthru
      _
    // Predicated region
    $region22: #{tpu_custom_call.1} parent=1 // pred_check
      _
    $region23: #{tpu_custom_call.1} parent=1 // pred_check_branch
      %65 = sbr.rel (0) target = $region25
    $region24: #{tpu_custom_call.1} parent=1 // pred_region
      _
    $region25: #{tpu_custom_call.1} parent=1 // pred_fallthru
      _
    // Predicated region
    $region26: #{tpu_custom_call.1} parent=1 // pred_check
      _
    $region27: #{tpu_custom_call.1} parent=1 // pred_check_branch
      %67 = sbr.rel (0) target = $region29
    $region28: #{tpu_custom_call.1} parent=1 // pred_region
      _
    $region29: #{tpu_custom_call.1} parent=1 // pred_fallthru
      _
    // Predicated region
    $region30: #{tpu_custom_call.1} parent=1 // pred_check
      _
    $region31: #{tpu_custom_call.1} parent=1 // pred_check_branch
      %69 = sbr.rel (0) target = $region33
    $region32: #{tpu_custom_call.1} parent=1 // pred_region
      %s71 = ssub.s32 4096, 4096
      %72 = vsyncadd [#allocation9], %s71
      %s73 = sshll.u32 [#allocation10], 4
      %s74 = int_to_ptr.vmem [resolvable:$true] %s73
      %79 = dma.hbm_to_vmem [thread:$0]  %s7, 4096, %s74, [#allocation9], 64, 64, 4
    $region33: #{tpu_custom_call.1} parent=1 // pred_fallthru
      _
    // Predicated region
    $region34: #{tpu_custom_call.1} parent=1 // pred_check
      _
    $region35: #{tpu_custom_call.1} parent=1 // pred_check_branch
      %81 = sbr.rel (0) target = $region37
    $region36: #{tpu_custom_call.1} parent=1 // pred_region
      _
    $region37: #{tpu_custom_call.1} parent=1 // pred_fallthru
      _
    // Predicated region
    $region38: #{tpu_custom_call.1} parent=1 // pred_check
      _
    $region39: #{tpu_custom_call.1} parent=1 // pred_check_branch
      %83 = sbr.rel (0) target = $region41
    $region40: #{tpu_custom_call.1} parent=1 // pred_region
      %84 = dma.done [#allocation3], 128
    $region41: #{tpu_custom_call.1} parent=1 // pred_fallthru
      _
    // Predicated region
    $region42: #{tpu_custom_call.1} parent=1 // pred_check
      _
    $region43: #{tpu_custom_call.1} parent=1 // pred_check_branch
      %86 = sbr.rel (0) target = $region45
    $region44: #{tpu_custom_call.1} parent=1 // pred_region
      %87 = dma.done [#allocation6], 2048
    $region45: #{tpu_custom_call.1} parent=1 // pred_fallthru
      _
    // Predicated region
    $region46: #{tpu_custom_call.1} parent=1 // pred_check
      _
    $region47: #{tpu_custom_call.1} parent=1 // pred_check_branch
      %89 = sbr.rel (0) target = $region49
    $region48: #{tpu_custom_call.1} parent=1 // pred_region
      %90 = dma.done [#allocation6], 32
    $region49: #{tpu_custom_call.1} parent=1 // pred_fallthru
      _
    // Predicated region
    $region50: #{tpu_custom_call.1} parent=1 // pred_check
      _
    $region51: #{tpu_custom_call.1} parent=1 // pred_check_branch
      %92 = sbr.rel (0) target = $region53
    $region52: #{tpu_custom_call.1} parent=1 // pred_region
      %93 = dma.done [#allocation9], 8192
    $region53: #{tpu_custom_call.1} parent=1 // pred_fallthru
      _
    // Predicated region
    $region54: #{tpu_custom_call.1} parent=1 // pred_check
      _
    $region55: #{tpu_custom_call.1} parent=1 // pred_check_branch
      %95 = sbr.rel (0) target = $region57
    $region56: #{tpu_custom_call.1} parent=1 // pred_region
      %96 = dma.done [#allocation9], 4096
    $region57: #{tpu_custom_call.1} parent=1 // pred_fallthru
      _
    %v98 = vld [vmem:[#allocation2] sm:$0xff]
    %v99 = vpack.c.bf16 %v98, %v98
    %v100 = vld [vmem:[#allocation5] sm:$0xff]
    %v101 = vld [vmem:[#allocation5 + $0x8] sm:$0xff]
    %v102 = vld [vmem:[#allocation5 + $0x10] sm:$0xff]
    %v103 = vld [vmem:[#allocation5 + $0x18] sm:$0xff]
    %v104 = vld [vmem:[#allocation5 + $0x20] sm:$0xff]
    %v105 = vld [vmem:[#allocation5 + $0x28] sm:$0xff]
    %v106 = vld [vmem:[#allocation5 + $0x30] sm:$0xff]
    %v107 = vld [vmem:[#allocation5 + $0x38] sm:$0xff]
    %v108 = vld [vmem:[#allocation5 + $0x40] sm:$0xff]
    %v109 = vld [vmem:[#allocation5 + $0x48] sm:$0xff]
    %v110 = vld [vmem:[#allocation5 + $0x50] sm:$0xff]
    %v111 = vld [vmem:[#allocation5 + $0x58] sm:$0xff]
    %v112 = vld [vmem:[#allocation5 + $0x60] sm:$0xff]
    %v113 = vld [vmem:[#allocation5 + $0x68] sm:$0xff]
    %v114 = vld [vmem:[#allocation5 + $0x70] sm:$0xff]
    %v115 = vld [vmem:[#allocation5 + $0x78] sm:$0xff]
    %v132 = vunpack.c.l.b16 %v100
    %v133 = vunpack.c.h.b16 %v100
    %v134 = vunpack.c.l.b16 %v101
    %v135 = vunpack.c.h.b16 %v101
    %v136 = vunpack.c.l.b16 %v102
    %v137 = vunpack.c.h.b16 %v102
    %v138 = vunpack.c.l.b16 %v103
    %v139 = vunpack.c.h.b16 %v103
    %v140 = vunpack.c.l.b16 %v104
    %v141 = vunpack.c.h.b16 %v104
    %v142 = vunpack.c.l.b16 %v105
    %v143 = vunpack.c.h.b16 %v105
    %v144 = vunpack.c.l.b16 %v106
    %v145 = vunpack.c.h.b16 %v106
    %v146 = vunpack.c.l.b16 %v107
    %v147 = vunpack.c.h.b16 %v107
    %v148 = vunpack.c.l.b16 %v108
    %v149 = vunpack.c.h.b16 %v108
    %v150 = vunpack.c.l.b16 %v109
    %v151 = vunpack.c.h.b16 %v109
    %v152 = vunpack.c.l.b16 %v110
    %v153 = vunpack.c.h.b16 %v110
    %v154 = vunpack.c.l.b16 %v111
    %v155 = vunpack.c.h.b16 %v111
    %v156 = vunpack.c.l.b16 %v112
    %v157 = vunpack.c.h.b16 %v112
    %v158 = vunpack.c.l.b16 %v113
    %v159 = vunpack.c.h.b16 %v113
    %v160 = vunpack.c.l.b16 %v114
    %v161 = vunpack.c.h.b16 %v114
    %v162 = vunpack.c.l.b16 %v115
    %v163 = vunpack.c.h.b16 %v115
    %v164 = vpack.c.b16 %v134, %v132
    %v165 = vpack.c.b16 %v135, %v133
    %v166 = vpack.c.b16 %v138, %v136
    %v167 = vpack.c.b16 %v139, %v137
    %v168 = vpack.c.b16 %v142, %v140
    %v169 = vpack.c.b16 %v143, %v141
    %v170 = vpack.c.b16 %v146, %v144
    %v171 = vpack.c.b16 %v147, %v145
    %v172 = vpack.c.b16 %v150, %v148
    %v173 = vpack.c.b16 %v151, %v149
    %v174 = vpack.c.b16 %v154, %v152
    %v175 = vpack.c.b16 %v155, %v153
    %v176 = vpack.c.b16 %v158, %v156
    %v177 = vpack.c.b16 %v159, %v157
    %v178 = vpack.c.b16 %v162, %v160
    %v179 = vpack.c.b16 %v163, %v161
    %196 = vmatprep.subr.bf16.mxu0 %v165
    %197 = vmatpush1.bf16.msra.mxu0 %v164
    %198 = vmatprep.subr.bf16.mxu0 %v167
    %199 = vmatpush1.bf16.msra.mxu0 %v166
    %200 = vmatprep.subr.bf16.mxu0 %v169
    %201 = vmatpush1.bf16.msra.mxu0 %v168
    %202 = vmatprep.subr.bf16.mxu0 %v171
    %203 = vmatpush1.bf16.msra.mxu0 %v170
    %204 = vmatprep.subr.bf16.mxu0 %v173
    %205 = vmatpush1.bf16.msra.mxu0 %v172
    %206 = vmatprep.subr.bf16.mxu0 %v175
    %207 = vmatpush1.bf16.msra.mxu0 %v174
    %208 = vmatprep.subr.bf16.mxu0 %v177
    %209 = vmatpush1.bf16.msra.mxu0 %v176
    %210 = vmatprep.subr.bf16.mxu0 %v179
    %211 = vmatpush1.bf16.msra.mxu0 %v178
    %212 = vmatprep.subr.bf16.mxu0 0
    %213 = vmatpush1.bf16.msra.mxu0 0
    %214 = vmatprep.subr.bf16.mxu0 0
    %215 = vmatpush1.bf16.msra.mxu0 0
    %216 = vmatprep.subr.bf16.mxu0 0
    %217 = vmatpush1.bf16.msra.mxu0 0
    %218 = vmatprep.subr.bf16.mxu0 0
    %219 = vmatpush1.bf16.msra.mxu0 0
    %220 = vmatprep.subr.bf16.mxu0 0
    %221 = vmatpush1.bf16.msra.mxu0 0
    %222 = vmatprep.subr.bf16.mxu0 0
    %223 = vmatpush1.bf16.msra.mxu0 0
    %224 = vmatprep.subr.bf16.mxu0 0
    %225 = vmatpush1.bf16.msra.mxu0 0
    %226 = vmatprep.subr.bf16.mxu0 0
    %227 = vmatpush1.bf16.msra.mxu0 0
    %228 = vmatprep.mubr.bf16.mxu0 0
    %229 = vmatmul.mubr.bf16.gmra.mrb[0].mxu0 %v99
    %v230 = vpop.f32.mrb[0].mxu0
    %v231 = vadd.f32 0.0, %v230
    %v232 = vpop.f32.mrb[0].mxu0
    %v233 = vadd.f32 0.0, %v232
    %v234 = vpop.f32.mrb[0].mxu0
    %v235 = vpop.f32.mrb[0].mxu0
    %236 = vdwg.mxu0
    %v237 = vld [vmem:[%s2] sm:$0x3]
    %v238 = vld [vmem:[#allocation7] sm:$0x3]
    %v239 = vrot.slane %v231, 4
    %v240 = vadd.f32 %v231, %v239
    %v241 = vrot.slane %v240, 2
    %v242 = vadd.f32 %v240, %v241
    %v243 = vrot.slane %v242, 1
    %v244 = vadd.f32 %v242, %v243
    %v245 = vrot.slane %v233, 4
    %v246 = vadd.f32 %v233, %v245
    %v247 = vrot.slane %v246, 2
    %v248 = vadd.f32 %v246, %v247
    %v249 = vrot.slane %v248, 1
    %v250 = vadd.f32 %v248, %v249
    %v251 = vrcp.pop 8.0
    %v252 = vmul.f32 %v244, %v251
    %v253 = vmul.f32 %v250, %v251
    %v254 = vsub.f32 %v231, %v252
    %v255 = vsub.f32 %v233, %v253
    %v256 = vmul.f32 %v254, %v254
    %v257 = vmul.f32 %v255, %v255
    %v258 = vrot.slane %v256, 4
    %v259 = vadd.f32 %v256, %v258
    %v260 = vrot.slane %v259, 2
    %v261 = vadd.f32 %v259, %v260
    %v262 = vrot.slane %v261, 1
    %v263 = vadd.f32 %v261, %v262
    %v264 = vrot.slane %v257, 4
    %v265 = vadd.f32 %v257, %v264
    %v266 = vrot.slane %v265, 2
    %v267 = vadd.f32 %v265, %v266
    %v268 = vrot.slane %v267, 1
    %v269 = vadd.f32 %v267, %v268
    %v270 = vmul.f32 %v263, %v251
    %v271 = vmul.f32 %v269, %v251
    %v272 = vadd.f32 %v270, 1e-05
    %v273 = vadd.f32 %v271, 1e-05
    %v274 = vrsqrt.pop %v272
    %v275 = vrsqrt.pop %v273
    %v278 = vcombine.low %v274, %v275
    %v280 = vunpack.c.l.s4 1966171168
    %v281 = vunpack.c.0.s8 %v280
    %v282 = vlaneseq
    %v283 = vshrl.u32 %v282, 7
    %v284 = vsub.s32 %v281, %v283
    %v285 = vrot.slane %v278, %v284
    %v287 = vunpack.c.l.s4 1966171168
    %v288 = vunpack.c.0.s8 %v287
    %v289 = vlaneseq
    %v290 = vshrl.u32 %v289, 7
    %v291 = vsub.s32 %v288, %v290
    %v292 = vrot.slane %v285, %v291
    %v294 = vmul.f32 %v237, %v292
    %v296 = vlaneseq
    %v297 = vshrl.u32 %v296, 7
    %v298 = vsub.s32 0, %v297
    %v299 = vrot.slane %v294, %v298
    %v300 = vlaneseq
    %v301 = vshrl.u32 %v300, 7
    %v302 = vsub.s32 1, %v301
    %v303 = vrot.slane %v294, %v302
    %v306 = vmul.f32 %v252, %v299
    %v307 = vmul.f32 %v253, %v303
    %v310 = vcombine.low %v306, %v307
    %v312 = vunpack.c.l.s4 1966171168
    %v313 = vunpack.c.0.s8 %v312
    %v314 = vlaneseq
    %v315 = vshrl.u32 %v314, 7
    %v316 = vsub.s32 %v313, %v315
    %v317 = vrot.slane %v310, %v316
    %v319 = vunpack.c.l.s4 1966171168
    %v320 = vunpack.c.0.s8 %v319
    %v321 = vlaneseq
    %v322 = vshrl.u32 %v321, 7
    %v323 = vsub.s32 %v320, %v322
    %v324 = vrot.slane %v317, %v323
    %v326 = vsub.f32 %v238, %v324
    %v327 = vmul.f32 %v231, %v299
    %v328 = vmul.f32 %v233, %v303
    %v330 = vlaneseq
    %v331 = vshrl.u32 %v330, 7
    %v332 = vsub.s32 0, %v331
    %v333 = vrot.slane %v326, %v332
    %v334 = vlaneseq
    %v335 = vshrl.u32 %v334, 7
    %v336 = vsub.s32 1, %v335
    %v337 = vrot.slane %v326, %v336
    %v340 = vadd.f32 %v327, %v333
    %v341 = vadd.f32 %v328, %v337
    %v342 = vmul.f32 %v340, 0.2
    %v343 = vmul.f32 %v341, 0.2
    %v344 = vmax.f32 %v340, %v342
    %v345 = vmax.f32 %v341, %v343
    %v346 = vpack.c.bf16 %v344, %v344
    %v347 = vpack.c.bf16 %v345, %v345
    %v348 = vld [vmem:[#allocation8] sm:$0xff]
    %v349 = vld [vmem:[#allocation8 + $0x8] sm:$0xff]
    %v350 = vld [vmem:[#allocation8 + $0x10] sm:$0xff]
    %v351 = vld [vmem:[#allocation8 + $0x18] sm:$0xff]
    %v352 = vld [vmem:[#allocation8 + $0x20] sm:$0xff]
    %v353 = vld [vmem:[#allocation8 + $0x28] sm:$0xff]
    %v354 = vld [vmem:[#allocation8 + $0x30] sm:$0xff]
    %v355 = vld [vmem:[#allocation8 + $0x38] sm:$0xff]
    %v356 = vld [vmem:[#allocation8 + $0x40] sm:$0xff]
    %v357 = vld [vmem:[#allocation8 + $0x48] sm:$0xff]
    %v358 = vld [vmem:[#allocation8 + $0x50] sm:$0xff]
    %v359 = vld [vmem:[#allocation8 + $0x58] sm:$0xff]
    %v360 = vld [vmem:[#allocation8 + $0x60] sm:$0xff]
    %v361 = vld [vmem:[#allocation8 + $0x68] sm:$0xff]
    %v362 = vld [vmem:[#allocation8 + $0x70] sm:$0xff]
    %v363 = vld [vmem:[#allocation8 + $0x78] sm:$0xff]
    %v364 = vld [vmem:[#allocation8 + $0x80] sm:$0xff]
    %v365 = vld [vmem:[#allocation8 + $0x88] sm:$0xff]
    %v366 = vld [vmem:[#allocation8 + $0x90] sm:$0xff]
    %v367 = vld [vmem:[#allocation8 + $0x98] sm:$0xff]
    %v368 = vld [vmem:[#allocation8 + $0xa0] sm:$0xff]
    %v369 = vld [vmem:[#allocation8 + $0xa8] sm:$0xff]
    %v370 = vld [vmem:[#allocation8 + $0xb0] sm:$0xff]
    %v371 = vld [vmem:[#allocation8 + $0xb8] sm:$0xff]
    %v372 = vld [vmem:[#allocation8 + $0xc0] sm:$0xff]
    %v373 = vld [vmem:[#allocation8 + $0xc8] sm:$0xff]
    %v374 = vld [vmem:[#allocation8 + $0xd0] sm:$0xff]
    %v375 = vld [vmem:[#allocation8 + $0xd8] sm:$0xff]
    %v376 = vld [vmem:[#allocation8 + $0xe0] sm:$0xff]
    %v377 = vld [vmem:[#allocation8 + $0xe8] sm:$0xff]
    %v378 = vld [vmem:[#allocation8 + $0xf0] sm:$0xff]
    %v379 = vld [vmem:[#allocation8 + $0xf8] sm:$0xff]
    %v380 = vld [vmem:[#allocation8 + $0x100] sm:$0xff]
    %v381 = vld [vmem:[#allocation8 + $0x108] sm:$0xff]
    %v382 = vld [vmem:[#allocation8 + $0x110] sm:$0xff]
    %v383 = vld [vmem:[#allocation8 + $0x118] sm:$0xff]
    %v384 = vld [vmem:[#allocation8 + $0x120] sm:$0xff]
    %v385 = vld [vmem:[#allocation8 + $0x128] sm:$0xff]
    %v386 = vld [vmem:[#allocation8 + $0x130] sm:$0xff]
    %v387 = vld [vmem:[#allocation8 + $0x138] sm:$0xff]
    %v388 = vld [vmem:[#allocation8 + $0x140] sm:$0xff]
    %v389 = vld [vmem:[#allocation8 + $0x148] sm:$0xff]
    %v390 = vld [vmem:[#allocation8 + $0x150] sm:$0xff]
    %v391 = vld [vmem:[#allocation8 + $0x158] sm:$0xff]
    %v392 = vld [vmem:[#allocation8 + $0x160] sm:$0xff]
    %v393 = vld [vmem:[#allocation8 + $0x168] sm:$0xff]
    %v394 = vld [vmem:[#allocation8 + $0x170] sm:$0xff]
    %v395 = vld [vmem:[#allocation8 + $0x178] sm:$0xff]
    %v396 = vld [vmem:[#allocation8 + $0x180] sm:$0xff]
    %v397 = vld [vmem:[#allocation8 + $0x188] sm:$0xff]
    %v398 = vld [vmem:[#allocation8 + $0x190] sm:$0xff]
    %v399 = vld [vmem:[#allocation8 + $0x198] sm:$0xff]
    %v400 = vld [vmem:[#allocation8 + $0x1a0] sm:$0xff]
    %v401 = vld [vmem:[#allocation8 + $0x1a8] sm:$0xff]
    %v402 = vld [vmem:[#allocation8 + $0x1b0] sm:$0xff]
    %v403 = vld [vmem:[#allocation8 + $0x1b8] sm:$0xff]
    %v404 = vld [vmem:[#allocation8 + $0x1c0] sm:$0xff]
    %v405 = vld [vmem:[#allocation8 + $0x1c8] sm:$0xff]
    %v406 = vld [vmem:[#allocation8 + $0x1d0] sm:$0xff]
    %v407 = vld [vmem:[#allocation8 + $0x1d8] sm:$0xff]
    %v408 = vld [vmem:[#allocation8 + $0x1e0] sm:$0xff]
    %v409 = vld [vmem:[#allocation8 + $0x1e8] sm:$0xff]
    %v410 = vld [vmem:[#allocation8 + $0x1f0] sm:$0xff]
    %v411 = vld [vmem:[#allocation8 + $0x1f8] sm:$0xff]
    %v476 = vunpack.c.l.b16 %v348
    %v477 = vunpack.c.h.b16 %v348
    %v478 = vunpack.c.l.b16 %v349
    %v479 = vunpack.c.h.b16 %v349
    %v480 = vunpack.c.l.b16 %v350
    %v481 = vunpack.c.h.b16 %v350
    %v482 = vunpack.c.l.b16 %v351
    %v483 = vunpack.c.h.b16 %v351
    %v484 = vunpack.c.l.b16 %v352
    %v485 = vunpack.c.h.b16 %v352
    %v486 = vunpack.c.l.b16 %v353
    %v487 = vunpack.c.h.b16 %v353
    %v488 = vunpack.c.l.b16 %v354
    %v489 = vunpack.c.h.b16 %v354
    %v490 = vunpack.c.l.b16 %v355
    %v491 = vunpack.c.h.b16 %v355
    %v492 = vunpack.c.l.b16 %v356
    %v493 = vunpack.c.h.b16 %v356
    %v494 = vunpack.c.l.b16 %v357
    %v495 = vunpack.c.h.b16 %v357
    %v496 = vunpack.c.l.b16 %v358
    %v497 = vunpack.c.h.b16 %v358
    %v498 = vunpack.c.l.b16 %v359
    %v499 = vunpack.c.h.b16 %v359
    %v500 = vunpack.c.l.b16 %v360
    %v501 = vunpack.c.h.b16 %v360
    %v502 = vunpack.c.l.b16 %v361
    %v503 = vunpack.c.h.b16 %v361
    %v504 = vunpack.c.l.b16 %v362
    %v505 = vunpack.c.h.b16 %v362
    %v506 = vunpack.c.l.b16 %v363
    %v507 = vunpack.c.h.b16 %v363
    %v508 = vunpack.c.l.b16 %v364
    %v509 = vunpack.c.h.b16 %v364
    %v510 = vunpack.c.l.b16 %v365
    %v511 = vunpack.c.h.b16 %v365
    %v512 = vunpack.c.l.b16 %v366
    %v513 = vunpack.c.h.b16 %v366
    %v514 = vunpack.c.l.b16 %v367
    %v515 = vunpack.c.h.b16 %v367
    %v516 = vunpack.c.l.b16 %v368
    %v517 = vunpack.c.h.b16 %v368
    %v518 = vunpack.c.l.b16 %v369
    %v519 = vunpack.c.h.b16 %v369
    %v520 = vunpack.c.l.b16 %v370
    %v521 = vunpack.c.h.b16 %v370
    %v522 = vunpack.c.l.b16 %v371
    %v523 = vunpack.c.h.b16 %v371
    %v524 = vunpack.c.l.b16 %v372
    %v525 = vunpack.c.h.b16 %v372
    %v526 = vunpack.c.l.b16 %v373
    %v527 = vunpack.c.h.b16 %v373
    %v528 = vunpack.c.l.b16 %v374
    %v529 = vunpack.c.h.b16 %v374
    %v530 = vunpack.c.l.b16 %v375
    %v531 = vunpack.c.h.b16 %v375
    %v532 = vunpack.c.l.b16 %v376
    %v533 = vunpack.c.h.b16 %v376
    %v534 = vunpack.c.l.b16 %v377
    %v535 = vunpack.c.h.b16 %v377
    %v536 = vunpack.c.l.b16 %v378
    %v537 = vunpack.c.h.b16 %v378
    %v538 = vunpack.c.l.b16 %v379
    %v539 = vunpack.c.h.b16 %v379
    %v540 = vunpack.c.l.b16 %v380
    %v541 = vunpack.c.h.b16 %v380
    %v542 = vunpack.c.l.b16 %v381
    %v543 = vunpack.c.h.b16 %v381
    %v544 = vunpack.c.l.b16 %v382
    %v545 = vunpack.c.h.b16 %v382
    %v546 = vunpack.c.l.b16 %v383
    %v547 = vunpack.c.h.b16 %v383
    %v548 = vunpack.c.l.b16 %v384
    %v549 = vunpack.c.h.b16 %v384
    %v550 = vunpack.c.l.b16 %v385
    %v551 = vunpack.c.h.b16 %v385
    %v552 = vunpack.c.l.b16 %v386
    %v553 = vunpack.c.h.b16 %v386
    %v554 = vunpack.c.l.b16 %v387
    %v555 = vunpack.c.h.b16 %v387
    %v556 = vunpack.c.l.b16 %v388
    %v557 = vunpack.c.h.b16 %v388
    %v558 = vunpack.c.l.b16 %v389
    %v559 = vunpack.c.h.b16 %v389
    %v560 = vunpack.c.l.b16 %v390
    %v561 = vunpack.c.h.b16 %v390
    %v562 = vunpack.c.l.b16 %v391
    %v563 = vunpack.c.h.b16 %v391
    %v564 = vunpack.c.l.b16 %v392
    %v565 = vunpack.c.h.b16 %v392
    %v566 = vunpack.c.l.b16 %v393
    %v567 = vunpack.c.h.b16 %v393
    %v568 = vunpack.c.l.b16 %v394
    %v569 = vunpack.c.h.b16 %v394
    %v570 = vunpack.c.l.b16 %v395
    %v571 = vunpack.c.h.b16 %v395
    %v572 = vunpack.c.l.b16 %v396
    %v573 = vunpack.c.h.b16 %v396
    %v574 = vunpack.c.l.b16 %v397
    %v575 = vunpack.c.h.b16 %v397
    %v576 = vunpack.c.l.b16 %v398
    %v577 = vunpack.c.h.b16 %v398
    %v578 = vunpack.c.l.b16 %v399
    %v579 = vunpack.c.h.b16 %v399
    %v580 = vunpack.c.l.b16 %v400
    %v581 = vunpack.c.h.b16 %v400
    %v582 = vunpack.c.l.b16 %v401
    %v583 = vunpack.c.h.b16 %v401
    %v584 = vunpack.c.l.b16 %v402
    %v585 = vunpack.c.h.b16 %v402
    %v586 = vunpack.c.l.b16 %v403
    %v587 = vunpack.c.h.b16 %v403
    %v588 = vunpack.c.l.b16 %v404
    %v589 = vunpack.c.h.b16 %v404
    %v590 = vunpack.c.l.b16 %v405
    %v591 = vunpack.c.h.b16 %v405
    %v592 = vunpack.c.l.b16 %v406
    %v593 = vunpack.c.h.b16 %v406
    %v594 = vunpack.c.l.b16 %v407
    %v595 = vunpack.c.h.b16 %v407
    %v596 = vunpack.c.l.b16 %v408
    %v597 = vunpack.c.h.b16 %v408
    %v598 = vunpack.c.l.b16 %v409
    %v599 = vunpack.c.h.b16 %v409
    %v600 = vunpack.c.l.b16 %v410
    %v601 = vunpack.c.h.b16 %v410
    %v602 = vunpack.c.l.b16 %v411
    %v603 = vunpack.c.h.b16 %v411
    %v604 = vpack.c.b16 %v480, %v476
    %v605 = vpack.c.b16 %v481, %v477
    %v606 = vpack.c.b16 %v482, %v478
    %v607 = vpack.c.b16 %v483, %v479
    %v608 = vpack.c.b16 %v488, %v484
    %v609 = vpack.c.b16 %v489, %v485
    %v610 = vpack.c.b16 %v490, %v486
    %v611 = vpack.c.b16 %v491, %v487
    %v612 = vpack.c.b16 %v496, %v492
    %v613 = vpack.c.b16 %v497, %v493
    %v614 = vpack.c.b16 %v498, %v494
    %v615 = vpack.c.b16 %v499, %v495
    %v616 = vpack.c.b16 %v504, %v500
    %v617 = vpack.c.b16 %v505, %v501
    %v618 = vpack.c.b16 %v506, %v502
    %v619 = vpack.c.b16 %v507, %v503
    %v620 = vpack.c.b16 %v512, %v508
    %v621 = vpack.c.b16 %v513, %v509
    %v622 = vpack.c.b16 %v514, %v510
    %v623 = vpack.c.b16 %v515, %v511
    %v624 = vpack.c.b16 %v520, %v516
    %v625 = vpack.c.b16 %v521, %v517
    %v626 = vpack.c.b16 %v522, %v518
    %v627 = vpack.c.b16 %v523, %v519
    %v628 = vpack.c.b16 %v528, %v524
    %v629 = vpack.c.b16 %v529, %v525
    %v630 = vpack.c.b16 %v530, %v526
    %v631 = vpack.c.b16 %v531, %v527
    %v632 = vpack.c.b16 %v536, %v532
    %v633 = vpack.c.b16 %v537, %v533
    %v634 = vpack.c.b16 %v538, %v534
    %v635 = vpack.c.b16 %v539, %v535
    %v636 = vpack.c.b16 %v544, %v540
    %v637 = vpack.c.b16 %v545, %v541
    %v638 = vpack.c.b16 %v546, %v542
    %v639 = vpack.c.b16 %v547, %v543
    %v640 = vpack.c.b16 %v552, %v548
    %v641 = vpack.c.b16 %v553, %v549
    %v642 = vpack.c.b16 %v554, %v550
    %v643 = vpack.c.b16 %v555, %v551
    %v644 = vpack.c.b16 %v560, %v556
    %v645 = vpack.c.b16 %v561, %v557
    %v646 = vpack.c.b16 %v562, %v558
    %v647 = vpack.c.b16 %v563, %v559
    %v648 = vpack.c.b16 %v568, %v564
    %v649 = vpack.c.b16 %v569, %v565
    %v650 = vpack.c.b16 %v570, %v566
    %v651 = vpack.c.b16 %v571, %v567
    %v652 = vpack.c.b16 %v576, %v572
    %v653 = vpack.c.b16 %v577, %v573
    %v654 = vpack.c.b16 %v578, %v574
    %v655 = vpack.c.b16 %v579, %v575
    %v656 = vpack.c.b16 %v584, %v580
    %v657 = vpack.c.b16 %v585, %v581
    %v658 = vpack.c.b16 %v586, %v582
    %v659 = vpack.c.b16 %v587, %v583
    %v660 = vpack.c.b16 %v592, %v588
    %v661 = vpack.c.b16 %v593, %v589
    %v662 = vpack.c.b16 %v594, %v590
    %v663 = vpack.c.b16 %v595, %v591
    %v664 = vpack.c.b16 %v600, %v596
    %v665 = vpack.c.b16 %v601, %v597
    %v666 = vpack.c.b16 %v602, %v598
    %v667 = vpack.c.b16 %v603, %v599
    %732 = vmatprep.subr.bf16.mxu0 %v605
    %733 = vmatpush1.bf16.msra.mxu0 %v604
    %734 = vmatprep.subr.bf16.mxu0 %v609
    %735 = vmatpush1.bf16.msra.mxu0 %v608
    %736 = vmatprep.subr.bf16.mxu0 %v613
    %737 = vmatpush1.bf16.msra.mxu0 %v612
    %738 = vmatprep.subr.bf16.mxu0 %v617
    %739 = vmatpush1.bf16.msra.mxu0 %v616
    %740 = vmatprep.subr.bf16.mxu0 %v621
    %741 = vmatpush1.bf16.msra.mxu0 %v620
    %742 = vmatprep.subr.bf16.mxu0 %v625
    %743 = vmatpush1.bf16.msra.mxu0 %v624
    %744 = vmatprep.subr.bf16.mxu0 %v629
    %745 = vmatpush1.bf16.msra.mxu0 %v628
    %746 = vmatprep.subr.bf16.mxu0 %v633
    %747 = vmatpush1.bf16.msra.mxu0 %v632
    %748 = vmatprep.subr.bf16.mxu0 %v637
    %749 = vmatpush1.bf16.msra.mxu0 %v636
    %750 = vmatprep.subr.bf16.mxu0 %v641
    %751 = vmatpush1.bf16.msra.mxu0 %v640
    %752 = vmatprep.subr.bf16.mxu0 %v645
    %753 = vmatpush1.bf16.msra.mxu0 %v644
    %754 = vmatprep.subr.bf16.mxu0 %v649
    %755 = vmatpush1.bf16.msra.mxu0 %v648
    %756 = vmatprep.subr.bf16.mxu0 %v653
    %757 = vmatpush1.bf16.msra.mxu0 %v652
    %758 = vmatprep.subr.bf16.mxu0 %v657
    %759 = vmatpush1.bf16.msra.mxu0 %v656
    %760 = vmatprep.subr.bf16.mxu0 %v661
    %761 = vmatpush1.bf16.msra.mxu0 %v660
    %762 = vmatprep.subr.bf16.mxu0 %v665
    %763 = vmatpush1.bf16.msra.mxu0 %v664
    %764 = vmatprep.mubr.bf16.mxu0 %v347
    %765 = vmatmul.mubr.bf16.gmra.mrb[0].mxu0 %v346
    %v766 = vpop.f32.mrb[0].mxu0
    %v767 = vadd.f32 0.0, %v766
    %v768 = vpop.f32.mrb[0].mxu0
    %v769 = vadd.f32 0.0, %v768
    %v770 = vpop.f32.mrb[0].mxu0
    %v771 = vpop.f32.mrb[0].mxu0
    %772 = vdwg.mxu0
    %773 = vmatprep.subr.bf16.mxu0 %v607
    %774 = vmatpush1.bf16.msra.mxu0 %v606
    %775 = vmatprep.subr.bf16.mxu0 %v611
    %776 = vmatpush1.bf16.msra.mxu0 %v610
    %777 = vmatprep.subr.bf16.mxu0 %v615
    %778 = vmatpush1.bf16.msra.mxu0 %v614
    %779 = vmatprep.subr.bf16.mxu0 %v619
    %780 = vmatpush1.bf16.msra.mxu0 %v618
    %781 = vmatprep.subr.bf16.mxu0 %v623
    %782 = vmatpush1.bf16.msra.mxu0 %v622
    %783 = vmatprep.subr.bf16.mxu0 %v627
    %784 = vmatpush1.bf16.msra.mxu0 %v626
    %785 = vmatprep.subr.bf16.mxu0 %v631
    %786 = vmatpush1.bf16.msra.mxu0 %v630
    %787 = vmatprep.subr.bf16.mxu0 %v635
    %788 = vmatpush1.bf16.msra.mxu0 %v634
    %789 = vmatprep.subr.bf16.mxu0 %v639
    %790 = vmatpush1.bf16.msra.mxu0 %v638
    %791 = vmatprep.subr.bf16.mxu0 %v643
    %792 = vmatpush1.bf16.msra.mxu0 %v642
    %793 = vmatprep.subr.bf16.mxu0 %v647
    %794 = vmatpush1.bf16.msra.mxu0 %v646
    %795 = vmatprep.subr.bf16.mxu0 %v651
    %796 = vmatpush1.bf16.msra.mxu0 %v650
    %797 = vmatprep.subr.bf16.mxu0 %v655
    %798 = vmatpush1.bf16.msra.mxu0 %v654
    %799 = vmatprep.subr.bf16.mxu0 %v659
    %800 = vmatpush1.bf16.msra.mxu0 %v658
    %801 = vmatprep.subr.bf16.mxu0 %v663
    %802 = vmatpush1.bf16.msra.mxu0 %v662
    %803 = vmatprep.subr.bf16.mxu0 %v667
    %804 = vmatpush1.bf16.msra.mxu0 %v666
    %805 = vmatprep.mubr.bf16.mxu0 %v347
    %806 = vmatmul.mubr.bf16.gmra.mrb[0].mxu0 %v346
    %v807 = vpop.f32.mrb[0].mxu0
    %v808 = vadd.f32 0.0, %v807
    %v809 = vpop.f32.mrb[0].mxu0
    %v810 = vadd.f32 0.0, %v809
    %v811 = vpop.f32.mrb[0].mxu0
    %v812 = vpop.f32.mrb[0].mxu0
    %813 = vdwg.mxu0
    %v814 = vld [vmem:[%s5] sm:$0xf]
    %v815 = vld [vmem:[%s6] sm:$0xf]
    %v816 = vrot.slane %v767, 4
    %v817 = vadd.f32 %v767, %v816
    %v818 = vrot.slane %v817, 2
    %v819 = vadd.f32 %v817, %v818
    %v820 = vrot.slane %v819, 1
    %v821 = vadd.f32 %v819, %v820
    %v822 = vrot.slane %v769, 4
    %v823 = vadd.f32 %v769, %v822
    %v824 = vrot.slane %v823, 2
    %v825 = vadd.f32 %v823, %v824
    %v826 = vrot.slane %v825, 1
    %v827 = vadd.f32 %v825, %v826
    %v828 = vrot.slane %v808, 4
    %v829 = vadd.f32 %v808, %v828
    %v830 = vrot.slane %v829, 2
    %v831 = vadd.f32 %v829, %v830
    %v832 = vrot.slane %v831, 1
    %v833 = vadd.f32 %v831, %v832
    %v834 = vrot.slane %v810, 4
    %v835 = vadd.f32 %v810, %v834
    %v836 = vrot.slane %v835, 2
    %v837 = vadd.f32 %v835, %v836
    %v838 = vrot.slane %v837, 1
    %v839 = vadd.f32 %v837, %v838
    %v840 = vmul.f32 %v821, %v251
    %v841 = vmul.f32 %v827, %v251
    %v842 = vmul.f32 %v833, %v251
    %v843 = vmul.f32 %v839, %v251
    %v844 = vsub.f32 %v767, %v840
    %v845 = vsub.f32 %v769, %v841
    %v846 = vsub.f32 %v808, %v842
    %v847 = vsub.f32 %v810, %v843
    %v848 = vmul.f32 %v844, %v844
    %v849 = vmul.f32 %v845, %v845
    %v850 = vmul.f32 %v846, %v846
    %v851 = vmul.f32 %v847, %v847
    %v852 = vrot.slane %v848, 4
    %v853 = vadd.f32 %v848, %v852
    %v854 = vrot.slane %v853, 2
    %v855 = vadd.f32 %v853, %v854
    %v856 = vrot.slane %v855, 1
    %v857 = vadd.f32 %v855, %v856
    %v858 = vrot.slane %v849, 4
    %v859 = vadd.f32 %v849, %v858
    %v860 = vrot.slane %v859, 2
    %v861 = vadd.f32 %v859, %v860
    %v862 = vrot.slane %v861, 1
    %v863 = vadd.f32 %v861, %v862
    %v864 = vrot.slane %v850, 4
    %v865 = vadd.f32 %v850, %v864
    %v866 = vrot.slane %v865, 2
    %v867 = vadd.f32 %v865, %v866
    %v868 = vrot.slane %v867, 1
    %v869 = vadd.f32 %v867, %v868
    %v870 = vrot.slane %v851, 4
    %v871 = vadd.f32 %v851, %v870
    %v872 = vrot.slane %v871, 2
    %v873 = vadd.f32 %v871, %v872
    %v874 = vrot.slane %v873, 1
    %v875 = vadd.f32 %v873, %v874
    %v876 = vmul.f32 %v857, %v251
    %v877 = vmul.f32 %v863, %v251
    %v878 = vmul.f32 %v869, %v251
    %v879 = vmul.f32 %v875, %v251
    %v880 = vadd.f32 %v876, 1e-05
    %v881 = vadd.f32 %v877, 1e-05
    %v882 = vadd.f32 %v878, 1e-05
    %v883 = vadd.f32 %v879, 1e-05
    %v884 = vrsqrt.pop %v880
    %v885 = vrsqrt.pop %v881
    %v886 = vrsqrt.pop %v882
    %v887 = vrsqrt.pop %v883
    %v892 = vcombine.low %v884, %v885
    %v893 = vcombine.low %v886, %v887
    %v895 = vunpack.c.l.s4 1966171168
    %v896 = vunpack.c.0.s8 %v895
    %v897 = vlaneseq
    %v898 = vshrl.u32 %v897, 7
    %v899 = vsub.s32 %v896, %v898
    %v900 = vrot.slane %v892, %v899
    %v902 = vunpack.c.l.s4 1966171168
    %v903 = vunpack.c.0.s8 %v902
    %v904 = vlaneseq
    %v905 = vshrl.u32 %v904, 7
    %v906 = vsub.s32 %v903, %v905
    %v907 = vrot.slane %v893, %v906
    %v908 = vcombine.low %v900, %v907
    %v910 = vunpack.c.l.s4 1966171168
    %v911 = vunpack.c.0.s8 %v910
    %v912 = vlaneseq
    %v913 = vshrl.u32 %v912, 7
    %v914 = vsub.s32 %v911, %v913
    %v915 = vrot.slane %v908, %v914
    %v917 = vmul.f32 %v814, %v915
    %v919 = vlaneseq
    %v920 = vshrl.u32 %v919, 7
    %v921 = vsub.s32 0, %v920
    %v922 = vrot.slane %v917, %v921
    %v923 = vlaneseq
    %v924 = vshrl.u32 %v923, 7
    %v925 = vsub.s32 1, %v924
    %v926 = vrot.slane %v917, %v925
    %v927 = vlaneseq
    %v928 = vshrl.u32 %v927, 7
    %v929 = vsub.s32 2, %v928
    %v930 = vrot.slane %v917, %v929
    %v931 = vlaneseq
    %v932 = vshrl.u32 %v931, 7
    %v933 = vsub.s32 3, %v932
    %v934 = vrot.slane %v917, %v933
    %v939 = vmul.f32 %v840, %v922
    %v940 = vmul.f32 %v841, %v926
    %v941 = vmul.f32 %v842, %v930
    %v942 = vmul.f32 %v843, %v934
    %v947 = vcombine.low %v939, %v940
    %v948 = vcombine.low %v941, %v942
    %v950 = vunpack.c.l.s4 1966171168
    %v951 = vunpack.c.0.s8 %v950
    %v952 = vlaneseq
    %v953 = vshrl.u32 %v952, 7
    %v954 = vsub.s32 %v951, %v953
    %v955 = vrot.slane %v947, %v954
    %v957 = vunpack.c.l.s4 1966171168
    %v958 = vunpack.c.0.s8 %v957
    %v959 = vlaneseq
    %v960 = vshrl.u32 %v959, 7
    %v961 = vsub.s32 %v958, %v960
    %v962 = vrot.slane %v948, %v961
    %v963 = vcombine.low %v955, %v962
    %v965 = vunpack.c.l.s4 1966171168
    %v966 = vunpack.c.0.s8 %v965
    %v967 = vlaneseq
    %v968 = vshrl.u32 %v967, 7
    %v969 = vsub.s32 %v966, %v968
    %v970 = vrot.slane %v963, %v969
    %v972 = vsub.f32 %v815, %v970
    %v973 = vmul.f32 %v767, %v922
    %v974 = vmul.f32 %v769, %v926
    %v975 = vmul.f32 %v808, %v930
    %v976 = vmul.f32 %v810, %v934
    %v978 = vlaneseq
    %v979 = vshrl.u32 %v978, 7
    %v980 = vsub.s32 0, %v979
    %v981 = vrot.slane %v972, %v980
    %v982 = vlaneseq
    %v983 = vshrl.u32 %v982, 7
    %v984 = vsub.s32 1, %v983
    %v985 = vrot.slane %v972, %v984
    %v986 = vlaneseq
    %v987 = vshrl.u32 %v986, 7
    %v988 = vsub.s32 2, %v987
    %v989 = vrot.slane %v972, %v988
    %v990 = vlaneseq
    %v991 = vshrl.u32 %v990, 7
    %v992 = vsub.s32 3, %v991
    %v993 = vrot.slane %v972, %v992
    %v998 = vadd.f32 %v973, %v981
    %v999 = vadd.f32 %v974, %v985
    %v1000 = vadd.f32 %v975, %v989
    %v1001 = vadd.f32 %v976, %v993
    %v1002 = vmul.f32 %v998, 0.2
    %v1003 = vmul.f32 %v999, 0.2
    %v1004 = vmul.f32 %v1000, 0.2
    %v1005 = vmul.f32 %v1001, 0.2
    %v1006 = vmax.f32 %v998, %v1002
    %v1007 = vmax.f32 %v999, %v1003
    %v1008 = vmax.f32 %v1000, %v1004
    %v1009 = vmax.f32 %v1001, %v1005
    %v1010 = vpack.c.bf16 %v1006, %v1006
    %v1011 = vpack.c.bf16 %v1007, %v1007
    %v1012 = vpack.c.bf16 %v1008, %v1008
    %v1013 = vpack.c.bf16 %v1009, %v1009
    %v1014 = vld [vmem:[#allocation10] sm:$0xf]
    %v1015 = vld [vmem:[#allocation10 + $0x4] sm:$0xf]
    %v1016 = vld [vmem:[#allocation10 + $0x8] sm:$0xf]
    %v1017 = vld [vmem:[#allocation10 + $0xc] sm:$0xf]
    %v1018 = vld [vmem:[#allocation10 + $0x10] sm:$0xf]
    %v1019 = vld [vmem:[#allocation10 + $0x14] sm:$0xf]
    %v1020 = vld [vmem:[#allocation10 + $0x18] sm:$0xf]
    %v1021 = vld [vmem:[#allocation10 + $0x1c] sm:$0xf]
    %v1022 = vld [vmem:[#allocation10 + $0x20] sm:$0xf]
    %v1023 = vld [vmem:[#allocation10 + $0x24] sm:$0xf]
    %v1024 = vld [vmem:[#allocation10 + $0x28] sm:$0xf]
    %v1025 = vld [vmem:[#allocation10 + $0x2c] sm:$0xf]
    %v1026 = vld [vmem:[#allocation10 + $0x30] sm:$0xf]
    %v1027 = vld [vmem:[#allocation10 + $0x34] sm:$0xf]
    %v1028 = vld [vmem:[#allocation10 + $0x38] sm:$0xf]
    %v1029 = vld [vmem:[#allocation10 + $0x3c] sm:$0xf]
    %v1030 = vld [vmem:[#allocation10 + $0x40] sm:$0xf]
    %v1031 = vld [vmem:[#allocation10 + $0x44] sm:$0xf]
    %v1032 = vld [vmem:[#allocation10 + $0x48] sm:$0xf]
    %v1033 = vld [vmem:[#allocation10 + $0x4c] sm:$0xf]
    %v1034 = vld [vmem:[#allocation10 + $0x50] sm:$0xf]
    %v1035 = vld [vmem:[#allocation10 + $0x54] sm:$0xf]
    %v1036 = vld [vmem:[#allocation10 + $0x58] sm:$0xf]
    %v1037 = vld [vmem:[#allocation10 + $0x5c] sm:$0xf]
    %v1038 = vld [vmem:[#allocation10 + $0x60] sm:$0xf]
    %v1039 = vld [vmem:[#allocation10 + $0x64] sm:$0xf]
    %v1040 = vld [vmem:[#allocation10 + $0x68] sm:$0xf]
    %v1041 = vld [vmem:[#allocation10 + $0x6c] sm:$0xf]
    %v1042 = vld [vmem:[#allocation10 + $0x70] sm:$0xf]
    %v1043 = vld [vmem:[#allocation10 + $0x74] sm:$0xf]
    %v1044 = vld [vmem:[#allocation10 + $0x78] sm:$0xf]
    %v1045 = vld [vmem:[#allocation10 + $0x7c] sm:$0xf]
    %v1046 = vld [vmem:[#allocation10 + $0x80] sm:$0xf]
    %v1047 = vld [vmem:[#allocation10 + $0x84] sm:$0xf]
    %v1048 = vld [vmem:[#allocation10 + $0x88] sm:$0xf]
    %v1049 = vld [vmem:[#allocation10 + $0x8c] sm:$0xf]
    %v1050 = vld [vmem:[#allocation10 + $0x90] sm:$0xf]
    %v1051 = vld [vmem:[#allocation10 + $0x94] sm:$0xf]
    %v1052 = vld [vmem:[#allocation10 + $0x98] sm:$0xf]
    %v1053 = vld [vmem:[#allocation10 + $0x9c] sm:$0xf]
    %v1054 = vld [vmem:[#allocation10 + $0xa0] sm:$0xf]
    %v1055 = vld [vmem:[#allocation10 + $0xa4] sm:$0xf]
    %v1056 = vld [vmem:[#allocation10 + $0xa8] sm:$0xf]
    %v1057 = vld [vmem:[#allocation10 + $0xac] sm:$0xf]
    %v1058 = vld [vmem:[#allocation10 + $0xb0] sm:$0xf]
    %v1059 = vld [vmem:[#allocation10 + $0xb4] sm:$0xf]
    %v1060 = vld [vmem:[#allocation10 + $0xb8] sm:$0xf]
    %v1061 = vld [vmem:[#allocation10 + $0xbc] sm:$0xf]
    %v1062 = vld [vmem:[#allocation10 + $0xc0] sm:$0xf]
    %v1063 = vld [vmem:[#allocation10 + $0xc4] sm:$0xf]
    %v1064 = vld [vmem:[#allocation10 + $0xc8] sm:$0xf]
    %v1065 = vld [vmem:[#allocation10 + $0xcc] sm:$0xf]
    %v1066 = vld [vmem:[#allocation10 + $0xd0] sm:$0xf]
    %v1067 = vld [vmem:[#allocation10 + $0xd4] sm:$0xf]
    %v1068 = vld [vmem:[#allocation10 + $0xd8] sm:$0xf]
    %v1069 = vld [vmem:[#allocation10 + $0xdc] sm:$0xf]
    %v1070 = vld [vmem:[#allocation10 + $0xe0] sm:$0xf]
    %v1071 = vld [vmem:[#allocation10 + $0xe4] sm:$0xf]
    %v1072 = vld [vmem:[#allocation10 + $0xe8] sm:$0xf]
    %v1073 = vld [vmem:[#allocation10 + $0xec] sm:$0xf]
    %v1074 = vld [vmem:[#allocation10 + $0xf0] sm:$0xf]
    %v1075 = vld [vmem:[#allocation10 + $0xf4] sm:$0xf]
    %v1076 = vld [vmem:[#allocation10 + $0xf8] sm:$0xf]
    %v1077 = vld [vmem:[#allocation10 + $0xfc] sm:$0xf]
    %v1078 = vld [vmem:[%s8] sm:$0x1]
    %v1080 = vlaneseq
    %v1081 = vshrl.u32 %v1080, 7
    %v1082 = vsub.s32 0, %v1081
    %v1083 = vrot.slane %v1078, %v1082
    %v1149 = vunpack.c.l.b16 %v1014
    %v1150 = vunpack.c.l.b16 %v1015
    %v1151 = vunpack.c.l.b16 %v1016
    %v1152 = vunpack.c.l.b16 %v1017
    %v1153 = vunpack.c.l.b16 %v1018
    %v1154 = vunpack.c.l.b16 %v1019
    %v1155 = vunpack.c.l.b16 %v1020
    %v1156 = vunpack.c.l.b16 %v1021
    %v1157 = vunpack.c.l.b16 %v1022
    %v1158 = vunpack.c.l.b16 %v1023
    %v1159 = vunpack.c.l.b16 %v1024
    %v1160 = vunpack.c.l.b16 %v1025
    %v1161 = vunpack.c.l.b16 %v1026
    %v1162 = vunpack.c.l.b16 %v1027
    %v1163 = vunpack.c.l.b16 %v1028
    %v1164 = vunpack.c.l.b16 %v1029
    %v1165 = vunpack.c.l.b16 %v1030
    %v1166 = vunpack.c.l.b16 %v1031
    %v1167 = vunpack.c.l.b16 %v1032
    %v1168 = vunpack.c.l.b16 %v1033
    %v1169 = vunpack.c.l.b16 %v1034
    %v1170 = vunpack.c.l.b16 %v1035
    %v1171 = vunpack.c.l.b16 %v1036
    %v1172 = vunpack.c.l.b16 %v1037
    %v1173 = vunpack.c.l.b16 %v1038
    %v1174 = vunpack.c.l.b16 %v1039
    %v1175 = vunpack.c.l.b16 %v1040
    %v1176 = vunpack.c.l.b16 %v1041
    %v1177 = vunpack.c.l.b16 %v1042
    %v1178 = vunpack.c.l.b16 %v1043
    %v1179 = vunpack.c.l.b16 %v1044
    %v1180 = vunpack.c.l.b16 %v1045
    %v1181 = vunpack.c.l.b16 %v1046
    %v1182 = vunpack.c.l.b16 %v1047
    %v1183 = vunpack.c.l.b16 %v1048
    %v1184 = vunpack.c.l.b16 %v1049
    %v1185 = vunpack.c.l.b16 %v1050
    %v1186 = vunpack.c.l.b16 %v1051
    %v1187 = vunpack.c.l.b16 %v1052
    %v1188 = vunpack.c.l.b16 %v1053
    %v1189 = vunpack.c.l.b16 %v1054
    %v1190 = vunpack.c.l.b16 %v1055
    %v1191 = vunpack.c.l.b16 %v1056
    %v1192 = vunpack.c.l.b16 %v1057
    %v1193 = vunpack.c.l.b16 %v1058
    %v1194 = vunpack.c.l.b16 %v1059
    %v1195 = vunpack.c.l.b16 %v1060
    %v1196 = vunpack.c.l.b16 %v1061
    %v1197 = vunpack.c.l.b16 %v1062
    %v1198 = vunpack.c.l.b16 %v1063
    %v1199 = vunpack.c.l.b16 %v1064
    %v1200 = vunpack.c.l.b16 %v1065
    %v1201 = vunpack.c.l.b16 %v1066
    %v1202 = vunpack.c.l.b16 %v1067
    %v1203 = vunpack.c.l.b16 %v1068
    %v1204 = vunpack.c.l.b16 %v1069
    %v1205 = vunpack.c.l.b16 %v1070
    %v1206 = vunpack.c.l.b16 %v1071
    %v1207 = vunpack.c.l.b16 %v1072
    %v1208 = vunpack.c.l.b16 %v1073
    %v1209 = vunpack.c.l.b16 %v1074
    %v1210 = vunpack.c.l.b16 %v1075
    %v1211 = vunpack.c.l.b16 %v1076
    %v1212 = vunpack.c.l.b16 %v1077
    %v1213 = vpack.c.b16 %v1150, %v1149
    %v1214 = vpack.c.b16 %v1152, %v1151
    %v1215 = vpack.c.b16 %v1154, %v1153
    %v1216 = vpack.c.b16 %v1156, %v1155
    %v1217 = vpack.c.b16 %v1158, %v1157
    %v1218 = vpack.c.b16 %v1160, %v1159
    %v1219 = vpack.c.b16 %v1162, %v1161
    %v1220 = vpack.c.b16 %v1164, %v1163
    %v1221 = vpack.c.b16 %v1166, %v1165
    %v1222 = vpack.c.b16 %v1168, %v1167
    %v1223 = vpack.c.b16 %v1170, %v1169
    %v1224 = vpack.c.b16 %v1172, %v1171
    %v1225 = vpack.c.b16 %v1174, %v1173
    %v1226 = vpack.c.b16 %v1176, %v1175
    %v1227 = vpack.c.b16 %v1178, %v1177
    %v1228 = vpack.c.b16 %v1180, %v1179
    %v1229 = vpack.c.b16 %v1182, %v1181
    %v1230 = vpack.c.b16 %v1184, %v1183
    %v1231 = vpack.c.b16 %v1186, %v1185
    %v1232 = vpack.c.b16 %v1188, %v1187
    %v1233 = vpack.c.b16 %v1190, %v1189
    %v1234 = vpack.c.b16 %v1192, %v1191
    %v1235 = vpack.c.b16 %v1194, %v1193
    %v1236 = vpack.c.b16 %v1196, %v1195
    %v1237 = vpack.c.b16 %v1198, %v1197
    %v1238 = vpack.c.b16 %v1200, %v1199
    %v1239 = vpack.c.b16 %v1202, %v1201
    %v1240 = vpack.c.b16 %v1204, %v1203
    %v1241 = vpack.c.b16 %v1206, %v1205
    %v1242 = vpack.c.b16 %v1208, %v1207
    %v1243 = vpack.c.b16 %v1210, %v1209
    %v1244 = vpack.c.b16 %v1212, %v1211
    %1277 = vmatprep.subr.bf16.mxu0 0
    %1278 = vmatpush1.bf16.msra.mxu0 %v1213
    %1279 = vmatprep.subr.bf16.mxu0 0
    %1280 = vmatpush1.bf16.msra.mxu0 %v1214
    %1281 = vmatprep.subr.bf16.mxu0 0
    %1282 = vmatpush1.bf16.msra.mxu0 %v1215
    %1283 = vmatprep.subr.bf16.mxu0 0
    %1284 = vmatpush1.bf16.msra.mxu0 %v1216
    %1285 = vmatprep.subr.bf16.mxu0 0
    %1286 = vmatpush1.bf16.msra.mxu0 %v1217
    %1287 = vmatprep.subr.bf16.mxu0 0
    %1288 = vmatpush1.bf16.msra.mxu0 %v1218
    %1289 = vmatprep.subr.bf16.mxu0 0
    %1290 = vmatpush1.bf16.msra.mxu0 %v1219
    %1291 = vmatprep.subr.bf16.mxu0 0
    %1292 = vmatpush1.bf16.msra.mxu0 %v1220
    %1293 = vmatprep.subr.bf16.mxu0 0
    %1294 = vmatpush1.bf16.msra.mxu0 %v1221
    %1295 = vmatprep.subr.bf16.mxu0 0
    %1296 = vmatpush1.bf16.msra.mxu0 %v1222
    %1297 = vmatprep.subr.bf16.mxu0 0
    %1298 = vmatpush1.bf16.msra.mxu0 %v1223
    %1299 = vmatprep.subr.bf16.mxu0 0
    %1300 = vmatpush1.bf16.msra.mxu0 %v1224
    %1301 = vmatprep.subr.bf16.mxu0 0
    %1302 = vmatpush1.bf16.msra.mxu0 %v1225
    %1303 = vmatprep.subr.bf16.mxu0 0
    %1304 = vmatpush1.bf16.msra.mxu0 %v1226
    %1305 = vmatprep.subr.bf16.mxu0 0
    %1306 = vmatpush1.bf16.msra.mxu0 %v1227
    %1307 = vmatprep.subr.bf16.mxu0 0
    %1308 = vmatpush1.bf16.msra.mxu0 %v1228
    %1309 = vmatprep.mubr.bf16.mxu0 %v1011
    %1310 = vmatmul.mubr.bf16.gmra.mrb[0].mxu0 %v1010
    %v1311 = vpop.f32.mrb[0].mxu0
    %v1312 = vadd.f32 %v1083, %v1311
    %v1313 = vpop.f32.mrb[0].mxu0
    %v1314 = vpop.f32.mrb[0].mxu0
    %v1315 = vpop.f32.mrb[0].mxu0
    %1316 = vdwg.mxu0
    %1317 = vmatprep.subr.bf16.mxu0 0
    %1318 = vmatpush1.bf16.msra.mxu0 %v1229
    %1319 = vmatprep.subr.bf16.mxu0 0
    %1320 = vmatpush1.bf16.msra.mxu0 %v1230
    %1321 = vmatprep.subr.bf16.mxu0 0
    %1322 = vmatpush1.bf16.msra.mxu0 %v1231
    %1323 = vmatprep.subr.bf16.mxu0 0
    %1324 = vmatpush1.bf16.msra.mxu0 %v1232
    %1325 = vmatprep.subr.bf16.mxu0 0
    %1326 = vmatpush1.bf16.msra.mxu0 %v1233
    %1327 = vmatprep.subr.bf16.mxu0 0
    %1328 = vmatpush1.bf16.msra.mxu0 %v1234
    %1329 = vmatprep.subr.bf16.mxu0 0
    %1330 = vmatpush1.bf16.msra.mxu0 %v1235
    %1331 = vmatprep.subr.bf16.mxu0 0
    %1332 = vmatpush1.bf16.msra.mxu0 %v1236
    %1333 = vmatprep.subr.bf16.mxu0 0
    %1334 = vmatpush1.bf16.msra.mxu0 %v1237
    %1335 = vmatprep.subr.bf16.mxu0 0
    %1336 = vmatpush1.bf16.msra.mxu0 %v1238
    %1337 = vmatprep.subr.bf16.mxu0 0
    %1338 = vmatpush1.bf16.msra.mxu0 %v1239
    %1339 = vmatprep.subr.bf16.mxu0 0
    %1340 = vmatpush1.bf16.msra.mxu0 %v1240
    %1341 = vmatprep.subr.bf16.mxu0 0
    %1342 = vmatpush1.bf16.msra.mxu0 %v1241
    %1343 = vmatprep.subr.bf16.mxu0 0
    %1344 = vmatpush1.bf16.msra.mxu0 %v1242
    %1345 = vmatprep.subr.bf16.mxu0 0
    %1346 = vmatpush1.bf16.msra.mxu0 %v1243
    %1347 = vmatprep.subr.bf16.mxu0 0
    %1348 = vmatpush1.bf16.msra.mxu0 %v1244
    %1349 = vmatprep.mubr.bf16.mxu0 %v1013
    %1350 = vmatmul.mubr.bf16.gmra.mrb[0].mxu0 %v1012
    %v1351 = vpop.f32.mrb[0].mxu0
    %v1352 = vadd.f32 %v1312, %v1351
    %v1353 = vpop.f32.mrb[0].mxu0
    %v1354 = vpop.f32.mrb[0].mxu0
    %v1355 = vpop.f32.mrb[0].mxu0
    %1356 = vdwg.mxu0
    %v1357 = vtanh.pop %v1352
    %1358 = vst [vmem:[#allocation11] sm:$0xff] %v1357
    // Predicated region
    $region58: #{tpu_custom_call.1} parent=1 // pred_check
      _
    $region59: #{tpu_custom_call.1} parent=1 // pred_check_branch
      %1360 = sbr.rel (0) target = $region61
    $region60: #{tpu_custom_call.1} parent=1 // pred_region
      %s1362 = ssub.s32 128, 128
      %1363 = vsyncadd [#allocation4], %s1362
      %s1365 = sshll.u32 [#allocation11], 4
      %s1366 = int_to_ptr.vmem [resolvable:$true] %s1365
      %1368 = dma.vmem_to_hbm [thread:$0]  %s1366, 128, %s9, [#allocation4]
    $region61: #{tpu_custom_call.1} parent=1 // pred_fallthru
      _
    // Predicated region
    $region62: #{tpu_custom_call.1} parent=1 // pred_check
      _
    $region63: #{tpu_custom_call.1} parent=1 // pred_check_branch
      %1370 = sbr.rel (0) target = $region65
    $region64: #{tpu_custom_call.1} parent=1 // pred_region
      %1371 = dma.done [#allocation4], 128
    $region65: #{tpu_custom_call.1} parent=1 // pred_fallthru
      _
    %1372 = vsyncpa [#allocation3], 1
    %1373 = vsyncpa [#allocation6], 1
    %1374 = vsyncpa [#allocation9], 1
    %1375 = vsyncpa [#allocation4], 1

</llo_original>
